<compile_context>
chip_gen: v6e
topology: v6e:2x2x1
jax: 0.10.0
libtpu: 0.0.40
codegen_flags: <defaults>
</compile_context>

<pallas_src>
import functools

import jax
import jax.numpy as jnp
from jax.experimental import pallas as pl
from jax.experimental.pallas import tpu as pltpu


def _round_up(a, b):
    return (a + b - 1) // b * b


def _cdiv(a, b):
    return (a + b - 1) // b


def _prod(xs):
    out = 1
    for v in xs:
        out *= int(v)
    return out


# Tile caps (elements).
_TK_MAX = 8192                      # reduction (lane) tile, reduce-last path
_TM_MAX = 4096                      # row tile cap, reduce-last path
_TB_MAX = 2048                      # kept-lane tile, reduce-middle path
_F32_CHUNK_BUDGET = 2 * 1024 * 1024  # soft bound on per-chunk f32 temporaries


def _tpu_config():
    """Returns (block_budget_bytes, vmem_limit_bytes, multi_core)."""
    vmem_cap = 64 * 1024 * 1024          # v7x-safe fallback (64 MiB / core)
    try:
        vmem_cap = int(pltpu.get_tpu_info().vmem_capacity_bytes)
    except Exception:
        pass
    multi_core = False
    try:
        kind = jax.devices()[0].device_kind.lower()
        multi_core = (
            "v4" in kind or "v7" in kind
            or ("v5" in kind and "lite" not in kind and "v5e" not in kind))
    except Exception:
        pass
    if vmem_cap >= 100 * 1024 * 1024:    # v5e / v6e: 128 MiB physical VMEM
        return 16 * 1024 * 1024, 64 * 1024 * 1024, multi_core
    return 8 * 1024 * 1024, 32 * 1024 * 1024, multi_core   # v7x: 64 MiB


# ---------------------------------------------------------------------------
# Kernel 1: reduce the LAST axis of a (M, K) array.
# Grid: (row blocks [parallel], K blocks [arbitrary, reduction]).
# ---------------------------------------------------------------------------
def _mean_last_kernel(x_ref, o_ref, acc_ref, *, true_k, tk, n_kb, mask_tail):
    kj = pl.program_id(1)
    n_full = tk // 128              # full 128-lane chunks
    rem = tk - n_full * 128         # remainder lanes (only when n_kb == 1)

    def lane_partial():
        # (tm, 128) f32 lane-partial sums; two independent add chains.
        lane = (jax.lax.broadcasted_iota(jnp.int32, (1, 128), 1)
                if mask_tail else None)
        parts = [None, None]
        for c in range(n_full):
            chunk = x_ref[:, c * 128:(c + 1) * 128].astype(jnp.float32)
            if mask_tail:
                col = kj * tk + (c * 128) + lane
                chunk = jnp.where(col < true_k, chunk, 0.0)
            s = c & 1
            parts[s] = chunk if parts[s] is None else parts[s] + chunk
        if parts[0] is None:
            return None
        return parts[0] if parts[1] is None else parts[0] + parts[1]

    inv_k = 1.0 / float(true_k)

    if n_kb == 1:
        # Single K block: skip the scratch round-trip entirely.
        p = lane_partial()
        total = None if p is None else jnp.sum(p, axis=-1, keepdims=True)
        if rem:
            r = jnp.sum(x_ref[:, n_full * 128:tk].astype(jnp.float32),
                        axis=-1, keepdims=True)
            total = r if total is None else total + r
        o_ref[...] = (total * inv_k).astype(o_ref.dtype)
    else:
        # tk is a multiple of 128 here (no remainder chunk).
        @pl.when(kj == 0)
        def _init():
            acc_ref[...] = jnp.zeros_like(acc_ref)

        acc_ref[...] += lane_partial()

        @pl.when(kj == n_kb - 1)
        def _finalize():
            s = jnp.sum(acc_ref[...], axis=-1, keepdims=True)
            o_ref[...] = (s * inv_k).astype(o_ref.dtype)


def _mean_last(x2d, true_k, block_budget, vmem_limit, multi_core):
    """Mean over the last axis of a 2-D array (no padding / copy)."""
    m, k = x2d.shape
    itemsize = jnp.dtype(x2d.dtype).itemsize
    row_mult = max(8, 32 // itemsize)        # packed-sublane multiple

    # Reduction-axis tile: full extent when it fits, else balanced multiples
    # of 128 (padding waste bounded to <128 columns per block, masked in-kernel).
    if k <= _TK_MAX:
        tk, n_kb, mask_tail = k, 1, False
    else:
        n_kb = _cdiv(_round_up(k, 128), _TK_MAX)
        tk = _round_up(_cdiv(k, n_kb), 128)
        n_kb = _cdiv(k, tk)
        mask_tail = (k % tk) != 0

    # Balanced row tiling from the generation-aware VMEM budget.
    budget_rows = (block_budget // (tk * itemsize)) // row_mult * row_mult
    budget_rows = max(row_mult, min(budget_rows, _TM_MAX))
    m_al = _round_up(m, row_mult)
    n_m = _cdiv(m_al, budget_rows)
    if multi_core and m_al >= 2 * row_mult:
        n_m = _round_up(n_m, 2)              # even split across TensorCores
    tm = _round_up(_cdiv(m_al, n_m), row_mult)
    tm = min(tm, m) if tm > m else tm        # never exceed the array extent
    grid_m = _cdiv(m, tm)

    kernel = functools.partial(_mean_last_kernel, true_k=true_k, tk=tk,
                               n_kb=n_kb, mask_tail=mask_tail)
    out = pl.pallas_call(
        kernel,
        out_shape=jax.ShapeDtypeStruct((m, 1), x2d.dtype),
        grid_spec=pltpu.PrefetchScalarGridSpec(
            num_scalar_prefetch=0,
            grid=(grid_m, n_kb),
            in_specs=[pl.BlockSpec((tm, tk), lambda i, j: (i, j))],
            out_specs=pl.BlockSpec((tm, 1), lambda i, j: (i, 0)),
            scratch_shapes=[pltpu.VMEM((tm, 128), jnp.float32)],
        ),
        compiler_params=pltpu.CompilerParams(
            dimension_semantics=("parallel", "arbitrary"),
            vmem_limit_bytes=vmem_limit,
        ),
        cost_estimate=pl.CostEstimate(
            flops=m * k,
            transcendentals=0,
            bytes_accessed=m * k * itemsize + m * itemsize,
        ),
    )(x2d)
    return out[:, 0]


# ---------------------------------------------------------------------------
# Kernel 2: reduce the MIDDLE axis of an (A, K, B) array (no transpose).
# Grid: (A blocks [parallel], B blocks [parallel], K blocks [arbitrary]).
# ---------------------------------------------------------------------------
def _mean_mid_kernel(x_ref, o_ref, acc_ref, *, true_k, tkm, sub_chunk, n_kb,
                     mask_tail):
    kj = pl.program_id(2)

    def block_partial():
        # Accumulate sublane-chunk reductions; two independent add chains.
        parts = [None, None]
        off, c = 0, 0
        while off < tkm:
            size = min(sub_chunk, tkm - off)
            xb = x_ref[:, off:off + size, :].astype(jnp.float32)
            if mask_tail:
                riota = jax.lax.broadcasted_iota(jnp.int32, (1, size, 1), 1)
                row = kj * tkm + off + riota
                xb = jnp.where(row < true_k, xb, 0.0)
            ps = jnp.sum(xb, axis=1)                 # (ta, tb)
            s = c & 1
            parts[s] = ps if parts[s] is None else parts[s] + ps
            off += size
            c += 1
        return parts[0] if parts[1] is None else parts[0] + parts[1]

    inv_k = 1.0 / float(true_k)

    if n_kb == 1:
        o_ref[...] = (block_partial() * inv_k).astype(o_ref.dtype)
    else:
        @pl.when(kj == 0)
        def _init():
            acc_ref[...] = jnp.zeros_like(acc_ref)

        acc_ref[...] += block_partial()

        @pl.when(kj == n_kb - 1)
        def _finalize():
            o_ref[...] = (acc_ref[...] * inv_k).astype(o_ref.dtype)


def _mean_mid(x3d, true_k, block_budget, vmem_limit, multi_core):
    """Mean over the middle axis of a 3-D (A, K, B) array."""
    a, k, b = x3d.shape
    itemsize = jnp.dtype(x3d.dtype).itemsize
    sub_mult = max(8, 32 // itemsize)

    # Lane tile over the kept trailing axis B.
    if b <= 128:
        tb = b
    else:
        n_b = _cdiv(_round_up(b, 128), _TB_MAX)
        tb = _round_up(_cdiv(b, n_b), 128)
        tb = min(tb, b)
    grid_b = _cdiv(b, tb)

    rows_total = max(sub_mult, block_budget // (tb * itemsize))   # ta * tkm

    # Middle (reduced) axis tile: prefer large tkm (few serial K steps) while
    # reserving some rows for the A dim.
    reserve_a = min(max(1, a), sub_mult)
    tkm_cap = (rows_total // reserve_a) // sub_mult * sub_mult
    tkm_cap = max(sub_mult, min(tkm_cap, 4096))
    if k <= tkm_cap:
        tkm, n_kb, mask_tail = k, 1, False
    else:
        n_kb = _cdiv(_round_up(k, sub_mult), tkm_cap)
        tkm = _round_up(_cdiv(k, n_kb), sub_mult)
        n_kb = _cdiv(k, tkm)
        mask_tail = (k % tkm) != 0

    # Leading kept axis A: remaining block budget, plus a soft bound on the
    # per-chunk f32 temporaries (ta * sub_mult * tb * 4 bytes).
    ta_budget = max(1, rows_total // tkm)
    chunk_limit = max(1, _F32_CHUNK_BUDGET // (sub_mult * tb * 4))
    ta_budget = min(ta_budget, max(chunk_limit, sub_mult))
    if a <= ta_budget:
        ta = a
    else:
        ta_cap = max(sub_mult, ta_budget // sub_mult * sub_mult)
        n_a = _cdiv(_round_up(a, sub_mult), ta_cap)
        ta = min(_round_up(_cdiv(a, n_a), sub_mult), a)
    grid_a = _cdiv(a, ta)

    # Megacore: give both TensorCores work when one block covers (A, B).
    if multi_core and grid_a * grid_b == 1:
        if a >= 2 * sub_mult:
            ta = _round_up(_cdiv(a, 2), sub_mult)
            grid_a = _cdiv(a, ta)
        elif b >= 256:
            tb = _round_up(_cdiv(b, 2), 128)
            grid_b = _cdiv(b, tb)

    kernel = functools.partial(_mean_mid_kernel, true_k=true_k, tkm=tkm,
                               sub_chunk=sub_mult, n_kb=n_kb,
                               mask_tail=mask_tail)
    out = pl.pallas_call(
        kernel,
        out_shape=jax.ShapeDtypeStruct((a, b), x3d.dtype),
        grid_spec=pltpu.PrefetchScalarGridSpec(
            num_scalar_prefetch=0,
            grid=(grid_a, grid_b, n_kb),
            in_specs=[pl.BlockSpec((ta, tkm, tb), lambda i, j, l: (i, l, j))],
            out_specs=pl.BlockSpec((ta, tb), lambda i, j, l: (i, j)),
            scratch_shapes=[pltpu.VMEM((ta, tb), jnp.float32)],
        ),
        compiler_params=pltpu.CompilerParams(
            dimension_semantics=("parallel", "parallel", "arbitrary"),
            vmem_limit_bytes=vmem_limit,
        ),
        cost_estimate=pl.CostEstimate(
            flops=a * k * b,
            transcendentals=0,
            bytes_accessed=a * k * b * itemsize + a * b * itemsize,
        ),
    )(x3d)
    return out


# ---------------------------------------------------------------------------
# Public wrapper: torch Mean(*axes).forward(x)
# ---------------------------------------------------------------------------
@functools.partial(jax.jit, static_argnums=(1,))
def mean_pallas(x, axes):
    """Equivalent of torch Mean(*axes).forward(x) (mean over `axes`)."""
    if not jnp.issubdtype(x.dtype, jnp.floating):
        raise ValueError(
            "mean_pallas only supports floating-point inputs (torch.mean also "
            f"rejects integer tensors); got {x.dtype}.")

    ndim = x.ndim
    if len(axes) == 0:
        axes = tuple(range(ndim))             # reduce over everything
    axes = tuple(sorted(set(a % ndim for a in axes)))
    keep = tuple(a for a in range(ndim) if a not in axes)
    keep_shape = tuple(int(x.shape[a]) for a in keep)

    k = _prod(x.shape[a] for a in axes)
    if k == 1:                                # mean over size-1 axes: identity
        return x.reshape(keep_shape)

    cfg = _tpu_config()
    lo, hi = axes[0], axes[-1]
    contiguous = (hi - lo + 1) == len(axes)

    if contiguous:
        a_sz = _prod(x.shape[:lo])
        b_sz = _prod(x.shape[hi + 1:])
        if b_sz == 1:
            # Trailing reduction: pure reshape, reduce-last kernel.
            out = _mean_last(x.reshape(a_sz, k), k, *cfg)
        else:
            # Middle/leading reduction: 3-D view, kept trailing axis stays on
            # the lane dimension -> no transpose copy, lane-dense output.
            out = _mean_mid(x.reshape(a_sz, k, b_sz), k, *cfg)
    else:
        # Non-contiguous reduce axes: transpose + trailing reduction.
        # TODO(synk): multi-pass contiguous reductions would avoid this copy.
        m = _prod(keep_shape)
        xt = jnp.transpose(x, keep + axes).reshape(m, k)
        out = _mean_last(xt, k, *cfg)

    return out.reshape(keep_shape)


if __name__ == "__main__":
    key = jax.random.PRNGKey(0)
    # NCHW input: batch=2, channels=4, spatial=16x16.
    x = jax.random.normal(key, (2, 4, 16, 16), dtype=jnp.float32)

    # Mean(2, 3): global average pooling over the spatial dims.
    y = mean_pallas(x, (2, 3))
    jax.block_until_ready(y)
    y_ref = jnp.mean(x, axis=(2, 3))
    assert y.shape == y_ref.shape == (2, 4)
    assert jnp.allclose(y, y_ref, atol=1e-5, rtol=1e-5)

    # Mean(1): non-trailing reduce axis, bf16, non-(8,128)-aligned sizes —
    # exercises the transpose-free middle-axis kernel.
    x2 = jax.random.normal(jax.random.PRNGKey(1), (3, 10, 32),
                           dtype=jnp.bfloat16)
    y2 = mean_pallas(x2, (1,))
    jax.block_until_ready(y2)
    y2_ref = jnp.mean(x2.astype(jnp.float32), axis=1).astype(jnp.bfloat16)
    assert y2.shape == y2_ref.shape == (3, 32)
    assert jnp.allclose(y2.astype(jnp.float32), y2_ref.astype(jnp.float32),
                        atol=2e-2, rtol=2e-2)

    print("KERNEL_OK")
</pallas_src>

<mosaic_0001>
module attributes {stable_mosaic.version = 11 : i64} {
  func.func @_mean_last_kernel(%arg0: i32, %arg1: i32, %arg2: memref<8x256xf32, #tpu.memory_space<vmem>>, %arg3: memref<8x1xf32, #tpu.memory_space<vmem>>, %arg4: memref<8x128xf32, #tpu.memory_space<vmem>>) attributes {dimension_semantics = [#tpu.dimension_semantics<parallel>, #tpu.dimension_semantics<arbitrary>], iteration_bounds = array<i64: 1, 1>, scalar_prefetch = 0 : i64, scratch_operands = 1 : i64, tpu.core_type = #tpu.core_type<tc>, window_params = [{transform_indices = @transform_0, window_bounds = array<i64: 8, 256>}, {transform_indices = @transform_1, window_bounds = array<i64: 8, 1>}]} {
    %c0 = arith.constant 0 : index
    %c0_0 = arith.constant 0 : index
    %0 = vector.load %arg2[%c0, %c0_0] : memref<8x256xf32, #tpu.memory_space<vmem>>, vector<8x128xf32>
    %c0_1 = arith.constant 0 : index
    %c128 = arith.constant 128 : index
    %1 = vector.load %arg2[%c0_1, %c128] : memref<8x256xf32, #tpu.memory_space<vmem>>, vector<8x128xf32>
    %2 = arith.addf %0, %1 : vector<8x128xf32>
    %cst = arith.constant dense<0.000000e+00> : vector<8xf32>
    %3 = vector.multi_reduction <add>, %2, %cst [1] : vector<8x128xf32> to vector<8xf32>
    %4 = vector.shape_cast %3 : vector<8xf32> to vector<8x1xf32>
    %cst_2 = arith.constant 3.906250e-03 : f32
    %5 = vector.broadcast %cst_2 : f32 to vector<8x1xf32>
    %6 = arith.mulf %4, %5 : vector<8x1xf32>
    %c0_3 = arith.constant 0 : index
    %c0_4 = arith.constant 0 : index
    %7 = vector.load %arg3[%c0_3, %c0_4] : memref<8x1xf32, #tpu.memory_space<vmem>>, vector<8x1xf32>
    tpu.vector_store %arg3[%c0_3, %c0_4], %6 {strides = array<i32>} : memref<8x1xf32, #tpu.memory_space<vmem>>, vector<8x1xf32>,
    return
  }
  func.func @transform_0(%arg0: i32, %arg1: i32) -> (i32, i32) {
    %c0_i32 = arith.constant 0 : i32
    return %arg0, %arg1 : i32, i32
  }
  func.func @transform_1(%arg0: i32, %arg1: i32) -> (i32, i32) {
    %c0_i32 = arith.constant 0 : i32
    %c0_i32_0 = arith.constant 0 : i32
    return %arg0, %c0_i32 : i32, i32
  }
}

</mosaic_0001>

<llo_original>
// kernel: squeeze.1
$region0: #{squeeze.1}
  %s0 = inlined_call_operand.vmem [shape: f32[8], index: 0, kind: input, shape index: {}]
  %s1 = inlined_call_operand.hbm [shape: f32[2,4], index: 1, kind: output, shape index: {}]
  $region1: #{squeeze.1} parent=0
    #allocation0 [shape = 'u8[1024]{0}', space=vmem, size = 0x400, scoped, tag = 'operand span for operand 1']
    #allocation1 [shape = 's32[1]{0}', space=sflag, size = 0x4, scoped, tag = 'scoped memory for squeeze.1']
    #allocation2 [shape = 'u8[4096]{0}', space=vmem, size = 0x1000, scoped, tag = 'scoped mem for output reshape']
    #allocation3 [shape = 'u8[4096]{0}', space=vmem, size = 0x1000, scoped, tag = 'scoped mem for input reshape']
    %2 = vsyncpa [#allocation1], 0
    %s4 = sshll.u32 1, 1
    %s5 = ssub.s32 %s4, 1
    %v6 = vld [vmem:[%s0] sm:%s5]
    %7 = vst [vmem:[#allocation3] sm:%s5] %v6
    %v8 = vld [vmem:[#allocation3] sm:$0x1]
    %vm9 = vcmask 31744
    %10 = vst.msk [vmem:[#allocation2] sm:$0x1] %vm9, %v8
    %v11 = vld [vmem:[#allocation3] sm:$0x1]
    %12 = vrot.lane.b32.xlu0 %v11, 124
    %v13 = vpop.permute.xlu0 %12
    %vm14 = vcmask 31744
    %s15 = scalar_lea.vmem [#allocation2], 1
    %16 = vst.msk [vmem:[%s15] sm:$0x1] %vm14, %v13
    %s18 = sshll.u32 1, 2
    %s19 = ssub.s32 %s18, 1
    %v21 = vld [vmem:[#allocation2] sm:%s19]
    %s22 = sshll.u32 1, 2
    %s23 = ssub.s32 %s22, 1
    %24 = vst [vmem:[#allocation0] sm:%s23] %v21
    %s26 = ssub.s32 32, 32
    %27 = vsyncadd [#allocation1], %s26
    %s29 = sshll.u32 [#allocation0], 4
    %s30 = int_to_ptr.vmem [resolvable:$true] %s29
    %32 = dma.vmem_to_hbm [thread:$0]  %s30, 32, %s1, [#allocation1]
    %33 = dma.done [#allocation1], 32
    %34 = vsyncpa [#allocation1], 1

// kernel: mean_pallas.1
$region0: #{mean_pallas.1}
  #allocation0 [shape = 'u32[]', space=smem, size = 0x4, offset = 0x4, fixed_abs, tag = 'smem constant byte address 0x4 - core index']
  #allocation1 [shape = 'u32[144,128]{1,0:T(1,128)}', space=vmem, size = 0x12000, scoped, tag = 'internal scratch']
  #allocation2 [shape = 'f32[8,128]{1,0:T(8,128)}', space=vmem, size = 0x1000, scoped, tag = 'scratch operand']
  %s0 = inlined_call_operand.vmem [shape: f32[8,256], index: 0, kind: input, shape index: {}]
  %s1 = inlined_call_operand.vmem [shape: f32[8,1], index: 1, kind: output, shape index: {}]
  %s2 = sld [smem:[#allocation0]]
  $region14: #{mean_pallas.1} parent=0
    _
  %s4 = ssub.s32 1, %s2
  %s5 = scalar_select 0, %s4, %s2
  // Predicated region
  $region2: #{mean_pallas.1} parent=0 // pred_check
    _
  $region3: #{mean_pallas.1} parent=0 // pred_check_branch
    %7 = sbr.rel (0) target = $region5
  $region4: #{mean_pallas.1} parent=0 // pred_region
    _
  $region5: #{mean_pallas.1} parent=0 // pred_fallthru
    _
  %v8 = vld [vmem:[%s0] sm:$0xff]
  %v9 = vld [vmem:[%s0 + $0x8] sm:$0xff]
  %v10 = vadd.f32 %v8, %v9
  %11 = vadd.xlane.f32.xlu0 %v10
  %v12 = vpop.xlane.xlu0 %11
  %v13 = vmul.f32 %v12, 0.00390625
  %vm14 = vcmask 7168
  %15 = vst.msk [vmem:[%s1] sm:$0xff] %vm14, %v13
  // Predicated region
  $region6: #{mean_pallas.1} parent=0 // pred_check
    _
  $region7: #{mean_pallas.1} parent=0 // pred_check_branch
    %17 = sbr.rel (0) target = $region9
  $region8: #{mean_pallas.1} parent=0 // pred_region
    _
  $region9: #{mean_pallas.1} parent=0 // pred_fallthru
    _
  // Predicated region
  $region10: #{mean_pallas.1} parent=0 // pred_check
    _
  $region11: #{mean_pallas.1} parent=0 // pred_check_branch
    %19 = sbr.rel (0) target = $region13
  $region12: #{mean_pallas.1} parent=0 // pred_region
    _
  $region13: #{mean_pallas.1} parent=0 // pred_fallthru
    _

</llo_original>
